<compile_context>
chip_gen: v7x
topology: tpu7x:2x2x1
jax: 0.10.0
libtpu: 0.0.40
codegen_flags: <defaults>
</compile_context>

<pallas_src>
import jax
import jax.numpy as jnp
from jax.experimental import pallas as pl
from jax.experimental.pallas import tpu as pltpu

# TODO(synk): the abstract base_model forward (a full transformer) has no
# clean single-kernel Pallas equivalent; its outputs are synthesized as inputs.


def _reward_kernel(scalars_ref, last_ref, w_ref, out_ref):
    # scalars_ref : SMEM (2,) f32 -> [mean_logits, rm_bias]
    # last_ref    : VMEM (B, H)   -> hidden_states[:, -1, :]
    # w_ref       : VMEM (1, H)   -> rm_head weight
    # out_ref     : VMEM (B, 1)   -> rewards
    mean_logits = scalars_ref[0]
    bias = scalars_ref[1]

    last = last_ref[...].astype(jnp.float32)          # (B, H) — only slice we compute on
    # Exactly the PyTorch grad-plumbing no-op, applied to the slice we use.
    last = last + 0.0 * mean_logits

    w = w_ref[...].astype(jnp.float32)                # (1, H)
    # nn.Linear(H, 1):  y = x @ W^T + b  ==  sum_h x*w  (VPU mul + XLU reduce)
    rewards = jnp.sum(last * w, axis=-1, keepdims=True) + bias   # (B, 1)
    out_ref[...] = rewards.astype(out_ref.dtype)


def vl_reward_forward(hidden_states, logits, rm_w, rm_b):
    """Pallas wrapper: returns (rewards,) with rewards of shape (B, 1)."""
    B, S, H = hidden_states.shape

    # XLA-side prep (cheap / fusable): last-token slice + global logits mean.
    last = hidden_states[:, S - 1, :]                              # (B, H)
    mean_logits = jnp.mean(logits).astype(jnp.float32)             # scalar
    scalars = jnp.stack(
        [mean_logits, rm_b.reshape(()).astype(jnp.float32)])       # (2,) f32

    rewards = pl.pallas_call(
        _reward_kernel,
        out_shape=jax.ShapeDtypeStruct((B, 1), jnp.float32),
        in_specs=[
            pl.BlockSpec(memory_space=pltpu.MemorySpace.SMEM),     # scalars
            pl.BlockSpec(memory_space=pltpu.MemorySpace.VMEM),     # last (B, H)
            pl.BlockSpec(memory_space=pltpu.MemorySpace.VMEM),     # rm_w (1, H)
        ],
        out_specs=pl.BlockSpec(memory_space=pltpu.MemorySpace.VMEM),
    )(scalars, last, rm_w)
    return (rewards,)


def _reference(hidden_states, logits, rm_w, rm_b):
    lhs = hidden_states + 0.0 * jnp.mean(logits)
    last = lhs[:, -1, :]
    return last @ rm_w.T + rm_b[None, :]


if __name__ == "__main__":
    B, S, H, V = 2, 8, 32, 64

    key = jax.random.PRNGKey(0)
    k_hid, k_log, k_w = jax.random.split(key, 3)

    # Synthetic "base model" outputs (hidden_states[-1] and logits).
    hidden_states = jax.random.normal(k_hid, (B, S, H), dtype=jnp.float32)
    logits = jax.random.normal(k_log, (B, S, V), dtype=jnp.float32)

    # rm_head = nn.Linear(H, 1): weight (1, H), bias zeros (nn.init.zeros_).
    bound = 1.0 / jnp.sqrt(jnp.float32(H))
    rm_w = jax.random.uniform(k_w, (1, H), jnp.float32, -bound, bound)
    rm_b = jnp.zeros((1,), dtype=jnp.float32)

    (rewards,) = vl_reward_forward(hidden_states, logits, rm_w, rm_b)
    rewards = jax.block_until_ready(rewards)

    ref = _reference(hidden_states, logits, rm_w, rm_b)
    assert rewards.shape == (B, 1)
    assert jnp.allclose(rewards, ref, atol=1e-5, rtol=1e-5)

    print("KERNEL_OK")
</pallas_src>

<mosaic_0001>
module attributes {stable_mosaic.version = 11 : i64} {
  func.func @_reward_kernel(%arg0: memref<2xf32, #tpu.memory_space<smem>>, %arg1: memref<2x32xf32, #tpu.memory_space<vmem>>, %arg2: memref<1x32xf32, #tpu.memory_space<vmem>>, %arg3: memref<2x1xf32, #tpu.memory_space<vmem>>) attributes {dimension_semantics = [], scalar_prefetch = 0 : i64, scratch_operands = 0 : i64, tpu.core_type = #tpu.core_type<tc>} {
    %c0 = arith.constant 0 : index
    %0 = memref.load %arg0[%c0] : memref<2xf32, #tpu.memory_space<smem>>
    %c1 = arith.constant 1 : index
    %1 = memref.load %arg0[%c1] : memref<2xf32, #tpu.memory_space<smem>>
    %c0_0 = arith.constant 0 : index
    %c0_1 = arith.constant 0 : index
    %2 = vector.load %arg1[%c0_0, %c0_1] : memref<2x32xf32, #tpu.memory_space<vmem>>, vector<2x32xf32>
    %cst = arith.constant 0.000000e+00 : f32
    %3 = arith.mulf %cst, %0 : f32
    %4 = vector.broadcast %3 : f32 to vector<2x32xf32>
    %5 = arith.addf %2, %4 : vector<2x32xf32>
    %c0_2 = arith.constant 0 : index
    %c0_3 = arith.constant 0 : index
    %6 = vector.load %arg2[%c0_2, %c0_3] : memref<1x32xf32, #tpu.memory_space<vmem>>, vector<1x32xf32>
    %7 = vector.broadcast %6 : vector<1x32xf32> to vector<2x32xf32>
    %8 = arith.mulf %5, %7 : vector<2x32xf32>
    %cst_4 = arith.constant dense<0.000000e+00> : vector<2xf32>
    %9 = vector.multi_reduction <add>, %8, %cst_4 [1] : vector<2x32xf32> to vector<2xf32>
    %10 = vector.shape_cast %9 : vector<2xf32> to vector<2x1xf32>
    %11 = vector.broadcast %1 : f32 to vector<2x1xf32>
    %12 = arith.addf %10, %11 : vector<2x1xf32>
    %c0_5 = arith.constant 0 : index
    %c0_6 = arith.constant 0 : index
    %13 = vector.load %arg3[%c0_5, %c0_6] : memref<2x1xf32, #tpu.memory_space<vmem>>, vector<2x1xf32>
    tpu.vector_store %arg3[%c0_5, %c0_6], %12 {strides = array<i32>} : memref<2x1xf32, #tpu.memory_space<vmem>>, vector<2x1xf32>,
    return
  }
}

</mosaic_0001>

<llo_original>
// kernel: tpu_custom_call.1
$region0: #{tpu_custom_call.1}
  #allocation0 [shape = 'u32[]', space=smem, size = 0x4, offset = 0x4, fixed_abs, tag = 'smem constant byte address 0x4 - core index']
  #allocation1 [shape = 'u32[144,128]{1,0:T(1,128)}', space=vmem, size = 0x12000, scoped, tag = 'internal scratch']
  %s0 = inlined_call_operand.hbm [shape: f32[2], index: 0, kind: input, shape index: {}]
  %s1 = inlined_call_operand.vmem [shape: f32[2,32], index: 1, kind: input, shape index: {}]
  %s2 = inlined_call_operand.vmem [shape: f32[1,32], index: 2, kind: input, shape index: {}]
  %s3 = inlined_call_operand.vmem [shape: f32[2,1], index: 3, kind: output, shape index: {}]
  %s4 = sld [smem:[#allocation0]]
  $region26: #{tpu_custom_call.1} parent=0
    _
  %s6 = ssub.s32 1, %s4
  %s7 = scalar_select 0, %s6, %s4
  $region1: #{tpu_custom_call.1} parent=0
    #allocation2 [shape = 'u8[512]{0}', space=smem, size = 0x200, scoped, tag = 'input window, operand 0, single buffered']
    #allocation3 [shape = 's32[1]{0}', space=sflag, size = 0x4, scoped, tag = 'scoped memory for tpu_custom_call.1']
    %8 = vsyncpa [#allocation3], 0
    // Predicated region
    $region2: #{tpu_custom_call.1} parent=1 // pred_check
      _
    $region3: #{tpu_custom_call.1} parent=1 // pred_check_branch
      %10 = sbr.rel (0) target = $region5
    $region4: #{tpu_custom_call.1} parent=1 // pred_region
      %s12 = ssub.s32 16, 16
      %13 = vsyncadd [#allocation3], %s12
      %16 = dma.hbm_to_smem %s0, 16, [#allocation2], [#allocation3]
    $region5: #{tpu_custom_call.1} parent=1 // pred_fallthru
      _
    // Predicated region
    $region6: #{tpu_custom_call.1} parent=1 // pred_check
      _
    $region7: #{tpu_custom_call.1} parent=1 // pred_check_branch
      %18 = sbr.rel (0) target = $region9
    $region8: #{tpu_custom_call.1} parent=1 // pred_region
      _
    $region9: #{tpu_custom_call.1} parent=1 // pred_fallthru
      _
    // Predicated region
    $region10: #{tpu_custom_call.1} parent=1 // pred_check
      _
    $region11: #{tpu_custom_call.1} parent=1 // pred_check_branch
      %20 = sbr.rel (0) target = $region13
    $region12: #{tpu_custom_call.1} parent=1 // pred_region
      _
    $region13: #{tpu_custom_call.1} parent=1 // pred_fallthru
      _
    // Predicated region
    $region14: #{tpu_custom_call.1} parent=1 // pred_check
      _
    $region15: #{tpu_custom_call.1} parent=1 // pred_check_branch
      %22 = sbr.rel (0) target = $region17
    $region16: #{tpu_custom_call.1} parent=1 // pred_region
      %23 = dma.done [#allocation3], 16
    $region17: #{tpu_custom_call.1} parent=1 // pred_fallthru
      _
    %24 = sfence
    %s25 = sld [smem:[#allocation2]]
    %s26 = sld [smem:[#allocation2 + $0x1]]
    %v27 = vld [vmem:[%s1] sm:$0x3]
    %s28 = smul.f32 %s25, 0.0
    %v29 = vstv %s28
    %v30 = vadd.f32 %v27, %v29
    %v31 = vld [vmem:[%s2] sm:$0x1]
    %v33 = vlaneseq
    %v34 = vshrl.u32 %v33, 7
    %v35 = vsub.s32 0, %v34
    %v36 = vrot.slane %v31, %v35
    %v38 = vmul.f32 %v30, %v36
    %vm39 = vcmask 254976
    %v40 = vsel %vm39, %v38, 0.0
    %41 = vadd.xlane.f32.xlu0 %v40
    %v42 = vpop.xlane.xlu0 %41
    %v43 = vstv %s26
    %v44 = vadd.f32 %v42, %v43
    %vm45 = vcmask 1024
    %46 = vst.msk [vmem:[%s3] sm:$0x3] %vm45, %v44
    // Predicated region
    $region18: #{tpu_custom_call.1} parent=1 // pred_check
      _
    $region19: #{tpu_custom_call.1} parent=1 // pred_check_branch
      %48 = sbr.rel (0) target = $region21
    $region20: #{tpu_custom_call.1} parent=1 // pred_region
      _
    $region21: #{tpu_custom_call.1} parent=1 // pred_fallthru
      _
    // Predicated region
    $region22: #{tpu_custom_call.1} parent=1 // pred_check
      _
    $region23: #{tpu_custom_call.1} parent=1 // pred_check_branch
      %50 = sbr.rel (0) target = $region25
    $region24: #{tpu_custom_call.1} parent=1 // pred_region
      _
    $region25: #{tpu_custom_call.1} parent=1 // pred_fallthru
      _
    %51 = vsyncpa [#allocation3], 1

</llo_original>
